<compile_context>
chip_gen: v5e
topology: v5e:2x2
jax: 0.10.0
libtpu: 0.0.40
codegen_flags: <defaults>
</compile_context>

<pallas_src>
import functools
import math

import jax
import jax.numpy as jnp
from jax import lax
from jax.experimental import pallas as pl
from jax.experimental.pallas import tpu as pltpu


# ------------------------------------------------------------------ utilities

def _round_up(x, m):
    return (x + m - 1) // m * m


def _gelu_tanh(x):
    # Exact match of torch.nn.GELU(approximate='tanh'):
    # 0.5 * x * (1 + tanh(sqrt(2/pi) * (x + 0.044715 * x**3)))
    c = math.sqrt(2.0 / math.pi)
    return 0.5 * x * (1.0 + jnp.tanh(c * (x + 0.044715 * x * x * x)))


@functools.lru_cache(maxsize=None)
def _device_kind():
    try:
        return jax.devices()[0].device_kind.lower()
    except Exception:
        return "unknown"


@functools.lru_cache(maxsize=None)
def _device_vmem_bytes():
    try:
        return int(pltpu.get_tpu_info().vmem_capacity_bytes)
    except Exception:
        return 64 << 20  # conservative (v7x per-TC VMEM)


@functools.lru_cache(maxsize=None)
def _default_tm():
    k = _device_kind()
    # v6e/v7x: per-step overhead is a bigger fraction of the MXU work -> bigger tile.
    return 512 if ("v6" in k or "v7" in k) else 256


@functools.lru_cache(maxsize=None)
def _default_gelu_dtype():
    k = _device_kind()
    # v6e/v7x have bf16 VPU/EUP; v5e (and older) do not -> keep GELU in f32 there.
    return jnp.bfloat16 if ("v6" in k or "v7" in k) else jnp.float32


# Chosen statically at import time (no per-call fallback / host sync).
_WEIGHT_PIPELINE = pl.Buffered(1) if hasattr(pl, "Buffered") else None


def _weight_spec(shape):
    # Constant-index (resident) operands: single-buffer them so the compiler
    # does not allocate a wasted second VMEM copy of the weights.
    if _WEIGHT_PIPELINE is None:
        return pl.BlockSpec(shape, lambda i: (0, 0))
    return pl.BlockSpec(shape, lambda i: (0, 0), pipeline_mode=_WEIGHT_PIPELINE)


# --------------------------------------------------------------------- kernel

def _make_mlp_kernel(h_chunk, n_chunks, gelu_dtype):
    def kernel(x_ref, wfc_ref, bfc_ref, wproj_ref, bproj_ref, o_ref, acc_ref):
        x = x_ref[...]                       # (tm, D_p) bf16
        acc_ref[...] = jnp.zeros_like(acc_ref)

        def body(c, carry):
            off = pl.multiple_of(c * h_chunk, h_chunk)
            # c_fc slab: bf16 x bf16 -> f32 accumulation on the MXU.
            h = jnp.dot(x, wfc_ref[:, pl.ds(off, h_chunk)],
                        preferred_element_type=jnp.float32)
            h = h + bfc_ref[:, pl.ds(off, h_chunk)]          # f32 bias add
            # tanh-GELU (bf16 on v6e/v7x, f32 on v5e).
            g = _gelu_tanh(h.astype(gelu_dtype))
            # partial c_proj: accumulate into f32 VMEM scratch.
            acc_ref[...] += jnp.dot(g.astype(wproj_ref.dtype),
                                    wproj_ref[pl.ds(off, h_chunk), :],
                                    preferred_element_type=jnp.float32)
            return carry

        lax.fori_loop(0, n_chunks, body, 0, unroll=(n_chunks <= 8))
        o_ref[...] = (acc_ref[...] + bproj_ref[...]).astype(o_ref.dtype)

    return kernel


# -------------------------------------------------------------------- wrapper

def prepare_params(params, compute_dtype=jnp.bfloat16):
    """One-time cast/pad of the MLP parameters (do NOT call per forward)."""
    D, H = params["w_fc"].shape
    D_p = _round_up(D, 128)
    H_p = _round_up(H, 128)
    return {
        "w_fc": jnp.pad(params["w_fc"].astype(compute_dtype),
                        ((0, D_p - D), (0, H_p - H))),
        "b_fc": jnp.pad(params["b_fc"].astype(jnp.float32).reshape(1, H),
                        ((0, 0), (0, H_p - H))),
        "w_proj": jnp.pad(params["w_proj"].astype(compute_dtype),
                          ((0, H_p - H), (0, D_p - D))),
        "b_proj": jnp.pad(params["b_proj"].astype(jnp.float32).reshape(1, D),
                          ((0, 0), (0, D_p - D))),
    }


def mlp_pallas(x2d, prep, *, tm=None, h_chunk=512, gelu_dtype=None):
    """x2d: [M, D] token rows; prep: output of prepare_params (padded, bf16)."""
    M, D = x2d.shape
    wfc, bfc, wpr, bpr = prep["w_fc"], prep["b_fc"], prep["w_proj"], prep["b_proj"]
    D_p, H_p = wfc.shape
    compute_dtype = wfc.dtype
    out_dtype = x2d.dtype

    if tm is None:
        tm = _default_tm()
    if gelu_dtype is None:
        gelu_dtype = _default_gelu_dtype()

    # Token tiling: multiple of 8 rows; ensure >= 2 grid steps where possible
    # so both v7x TensorCores get work (dimension_semantics=('parallel',)).
    M_p = _round_up(M, 8)
    tm = max(8, min(tm, M_p))
    if M_p == tm and M_p >= 16:
        tm = _round_up(M_p // 2, 8)
    M_p = _round_up(M, tm)

    # Hidden chunk: multiple of 128 that divides H_p.
    hc = (min(h_chunk, H_p) // 128) * 128
    while H_p % hc != 0:
        hc -= 128
    n_chunks = H_p // hc

    # Pad/cast activations (weights are already prepared).
    x_p = x2d.astype(compute_dtype)
    if M_p != M or D_p != D:
        x_p = jnp.pad(x_p, ((0, M_p - M), (0, D_p - D)))

    # VMEM budget from the real footprint, clamped to device capacity.
    w_item = jnp.dtype(compute_dtype).itemsize
    n_buf = 1 if _WEIGHT_PIPELINE is not None else 2
    w_bytes = n_buf * 2 * D_p * H_p * w_item                 # both weight mats
    b_bytes = n_buf * (H_p + D_p) * 4
    io_bytes = 2 * tm * D_p * (w_item + jnp.dtype(out_dtype).itemsize)
    tmp_bytes = tm * D_p * 4 + 2 * tm * hc * 4               # acc scratch + h/g slab
    needed = w_bytes + b_bytes + io_bytes + tmp_bytes + (8 << 20)
    vmem_limit = int(max(16 << 20, min(needed, _device_vmem_bytes() - (8 << 20))))

    cost = pl.CostEstimate(
        flops=4 * M_p * D_p * H_p,
        transcendentals=M_p * H_p,
        bytes_accessed=(M_p * D_p * (w_item + jnp.dtype(out_dtype).itemsize)
                        + 2 * D_p * H_p * w_item + (H_p + D_p) * 4),
    )

    grid_spec = pltpu.PrefetchScalarGridSpec(
        num_scalar_prefetch=0,
        grid=(M_p // tm,),
        in_specs=[
            pl.BlockSpec((tm, D_p), lambda i: (i, 0)),   # x token tile
            _weight_spec((D_p, H_p)),                    # c_fc weight (resident)
            _weight_spec((1, H_p)),                      # c_fc bias
            _weight_spec((H_p, D_p)),                    # c_proj weight (resident)
            _weight_spec((1, D_p)),                      # c_proj bias
        ],
        out_specs=pl.BlockSpec((tm, D_p), lambda i: (i, 0)),
        scratch_shapes=[pltpu.VMEM((tm, D_p), jnp.float32)],
    )

    y_p = pl.pallas_call(
        _make_mlp_kernel(hc, n_chunks, gelu_dtype),
        out_shape=jax.ShapeDtypeStruct((M_p, D_p), out_dtype),
        grid_spec=grid_spec,
        compiler_params=pltpu.CompilerParams(
            dimension_semantics=("parallel",),
            vmem_limit_bytes=vmem_limit),
        cost_estimate=cost,
    )(x_p, wfc, bfc, wpr, bpr)

    return y_p[:M, :D]


def mlp_forward(x, prep):
    """x: [batch, seq, n_embd] -> [batch, seq, n_embd]."""
    B, T, D = x.shape
    y2d = mlp_pallas(x.reshape(B * T, D), prep)
    return y2d.reshape(B, T, D)


def init_params(key, n_embd, n_layer):
    # Mirrors _init_weight: normal(std=0.02) for c_fc, normal(std=0.02*(2*n_layer)^-0.5)
    # for c_proj, zero biases.  Weights stored as [in, out] (transpose of nn.Linear.weight).
    k1, k2 = jax.random.split(key)
    hidden = 4 * n_embd
    std_fc = 0.02
    std_proj = 0.02 * (2 * n_layer) ** (-0.5)
    return {
        "w_fc": (std_fc * jax.random.normal(k1, (n_embd, hidden))).astype(jnp.float32),
        "b_fc": jnp.zeros((hidden,), jnp.float32),
        "w_proj": (std_proj * jax.random.normal(k2, (hidden, n_embd))).astype(jnp.float32),
        "b_proj": jnp.zeros((n_embd,), jnp.float32),
    }


if __name__ == "__main__":
    # Small config: batch=2, seq=8, n_embd=32 (hidden = 4*32 = 128), n_layer=12.
    batch, seq, n_embd, n_layer = 2, 8, 32, 12

    key = jax.random.PRNGKey(0)
    kx, kp = jax.random.split(key)
    x = jax.random.normal(kx, (batch, seq, n_embd), dtype=jnp.float32)
    params = init_params(kp, n_embd, n_layer)

    # One-time weight preparation (cast + pad), then the hot-path call.
    prep = prepare_params(params)
    y = mlp_forward(x, prep)
    y = jax.block_until_ready(y)

    # Pure-JAX f32 reference (tolerance loosened for bf16 MXU operands).
    x2d = x.reshape(batch * seq, n_embd)
    h_ref = x2d @ params["w_fc"] + params["b_fc"]
    y_ref = (_gelu_tanh(h_ref) @ params["w_proj"] + params["b_proj"]).reshape(
        batch, seq, n_embd)

    assert y.shape == x.shape
    assert jnp.allclose(y.astype(jnp.float32), y_ref, atol=5e-3, rtol=5e-2), \
        "mismatch vs reference"

    print("KERNEL_OK")
</pallas_src>

<mosaic_0001>
module attributes {stable_mosaic.version = 11 : i64} {
  func.func @kernel(%arg0: i32, %arg1: memref<8x128xbf16, #tpu.memory_space<vmem>>, %arg2: memref<128x128xbf16, #tpu.memory_space<vmem>>, %arg3: memref<1x128xf32, #tpu.memory_space<vmem>>, %arg4: memref<128x128xbf16, #tpu.memory_space<vmem>>, %arg5: memref<1x128xf32, #tpu.memory_space<vmem>>, %arg6: memref<8x128xf32, #tpu.memory_space<vmem>>, %arg7: memref<8x128xf32, #tpu.memory_space<vmem>>) attributes {dimension_semantics = [#tpu.dimension_semantics<parallel>], iteration_bounds = array<i64: 2>, scalar_prefetch = 0 : i64, scratch_operands = 1 : i64, tpu.core_type = #tpu.core_type<tc>, window_params = [{transform_indices = @transform_0, window_bounds = array<i64: 8, 128>}, {pipeline_mode = #tpu.pipeline_mode<synchronous>, transform_indices = @transform_1, window_bounds = array<i64: 128, 128>}, {pipeline_mode = #tpu.pipeline_mode<synchronous>, transform_indices = @transform_2, window_bounds = array<i64: 1, 128>}, {pipeline_mode = #tpu.pipeline_mode<synchronous>, transform_indices = @transform_3, window_bounds = array<i64: 128, 128>}, {pipeline_mode = #tpu.pipeline_mode<synchronous>, transform_indices = @transform_4, window_bounds = array<i64: 1, 128>}, {transform_indices = @transform_5, window_bounds = array<i64: 8, 128>}]} {
    %c0 = arith.constant 0 : index
    %c0_0 = arith.constant 0 : index
    %0 = vector.load %arg1[%c0, %c0_0] : memref<8x128xbf16, #tpu.memory_space<vmem>>, vector<8x128xbf16>
    %cst = arith.constant 0.000000e+00 : f32
    %1 = vector.broadcast %cst : f32 to vector<8x128xf32>
    %c0_1 = arith.constant 0 : index
    %c0_2 = arith.constant 0 : index
    %2 = vector.load %arg7[%c0_1, %c0_2] : memref<8x128xf32, #tpu.memory_space<vmem>>, vector<8x128xf32>
    tpu.vector_store %arg7[%c0_1, %c0_2], %1 {strides = array<i32>} : memref<8x128xf32, #tpu.memory_space<vmem>>, vector<8x128xf32>,
    %c0_i32 = arith.constant 0 : i32
    %c128_i32 = arith.constant 128 : i32
    %3 = arith.muli %c0_i32, %c128_i32 : i32
    %4 = tpu.assume_multiple %3, 128 : i32
    %c0_3 = arith.constant 0 : index
    %5 = arith.index_cast %4 : i32 to index
    %6 = vector.load %arg2[%c0_3, %5] : memref<128x128xbf16, #tpu.memory_space<vmem>>, vector<128x128xbf16>
    %cst_4 = arith.constant dense<0.000000e+00> : vector<8x128xf32>
    %7 = tpu.matmul %0, %6, %cst_4 {dimension_numbers = #tpu.dot_dimension_numbers<[1], [0], [0], [1], [0, 0, 1, 1], [], []>} : vector<8x128xbf16>, vector<128x128xbf16>, vector<8x128xf32> -> vector<8x128xf32>
    %c0_5 = arith.constant 0 : index
    %8 = arith.index_cast %4 : i32 to index
    %9 = vector.load %arg3[%c0_5, %8] : memref<1x128xf32, #tpu.memory_space<vmem>>, vector<1x128xf32>
    %10 = vector.broadcast %9 : vector<1x128xf32> to vector<8x128xf32>
    %11 = arith.addf %7, %10 : vector<8x128xf32>
    %cst_6 = arith.constant 5.000000e-01 : f32
    %12 = vector.broadcast %cst_6 : f32 to vector<8x128xf32>
    %13 = arith.mulf %12, %11 : vector<8x128xf32>
    %cst_7 = arith.constant 4.471500e-02 : f32
    %14 = vector.broadcast %cst_7 : f32 to vector<8x128xf32>
    %15 = arith.mulf %14, %11 : vector<8x128xf32>
    %16 = arith.mulf %15, %11 : vector<8x128xf32>
    %17 = arith.mulf %16, %11 : vector<8x128xf32>
    %18 = arith.addf %11, %17 : vector<8x128xf32>
    %cst_8 = arith.constant 0.797884583 : f32
    %19 = vector.broadcast %cst_8 : f32 to vector<8x128xf32>
    %20 = arith.mulf %19, %18 : vector<8x128xf32>
    %21 = math.tanh %20 : vector<8x128xf32>
    %cst_9 = arith.constant 1.000000e+00 : f32
    %22 = vector.broadcast %cst_9 : f32 to vector<8x128xf32>
    %23 = arith.addf %22, %21 : vector<8x128xf32>
    %24 = arith.mulf %13, %23 : vector<8x128xf32>
    %c0_10 = arith.constant 0 : index
    %c0_11 = arith.constant 0 : index
    %25 = vector.load %arg7[%c0_10, %c0_11] : memref<8x128xf32, #tpu.memory_space<vmem>>, vector<8x128xf32>
    %26 = arith.truncf %24 : vector<8x128xf32> to vector<8x128xbf16>
    %27 = arith.index_cast %4 : i32 to index
    %c0_12 = arith.constant 0 : index
    %28 = vector.load %arg4[%27, %c0_12] : memref<128x128xbf16, #tpu.memory_space<vmem>>, vector<128x128xbf16>
    %cst_13 = arith.constant dense<0.000000e+00> : vector<8x128xf32>
    %29 = tpu.matmul %26, %28, %cst_13 {dimension_numbers = #tpu.dot_dimension_numbers<[1], [0], [0], [1], [0, 0, 1, 1], [], []>} : vector<8x128xbf16>, vector<128x128xbf16>, vector<8x128xf32> -> vector<8x128xf32>
    %30 = arith.addf %25, %29 : vector<8x128xf32>
    %c0_14 = arith.constant 0 : index
    %c0_15 = arith.constant 0 : index
    %31 = vector.load %arg7[%c0_14, %c0_15] : memref<8x128xf32, #tpu.memory_space<vmem>>, vector<8x128xf32>
    tpu.vector_store %arg7[%c0_14, %c0_15], %30 {strides = array<i32>} : memref<8x128xf32, #tpu.memory_space<vmem>>, vector<8x128xf32>,
    %c1_i32 = arith.constant 1 : i32
    %c0_16 = arith.constant 0 : index
    %c0_17 = arith.constant 0 : index
    %32 = vector.load %arg7[%c0_16, %c0_17] : memref<8x128xf32, #tpu.memory_space<vmem>>, vector<8x128xf32>
    %c0_18 = arith.constant 0 : index
    %c0_19 = arith.constant 0 : index
    %33 = vector.load %arg5[%c0_18, %c0_19] : memref<1x128xf32, #tpu.memory_space<vmem>>, vector<1x128xf32>
    %34 = vector.broadcast %33 : vector<1x128xf32> to vector<8x128xf32>
    %35 = arith.addf %32, %34 : vector<8x128xf32>
    %c0_20 = arith.constant 0 : index
    %c0_21 = arith.constant 0 : index
    %36 = vector.load %arg6[%c0_20, %c0_21] : memref<8x128xf32, #tpu.memory_space<vmem>>, vector<8x128xf32>
    tpu.vector_store %arg6[%c0_20, %c0_21], %35 {strides = array<i32>} : memref<8x128xf32, #tpu.memory_space<vmem>>, vector<8x128xf32>,
    return
  }
  func.func @transform_0(%arg0: i32) -> (i32, i32) {
    %c0_i32 = arith.constant 0 : i32
    %c0_i32_0 = arith.constant 0 : i32
    return %arg0, %c0_i32 : i32, i32
  }
  func.func @transform_1(%arg0: i32) -> (i32, i32) {
    %c0_i32 = arith.constant 0 : i32
    %c0_i32_0 = arith.constant 0 : i32
    %c0_i32_1 = arith.constant 0 : i32
    return %c0_i32, %c0_i32_0 : i32, i32
  }
  func.func @transform_2(%arg0: i32) -> (i32, i32) {
    %c0_i32 = arith.constant 0 : i32
    %c0_i32_0 = arith.constant 0 : i32
    %c0_i32_1 = arith.constant 0 : i32
    return %c0_i32, %c0_i32_0 : i32, i32
  }
  func.func @transform_3(%arg0: i32) -> (i32, i32) {
    %c0_i32 = arith.constant 0 : i32
    %c0_i32_0 = arith.constant 0 : i32
    %c0_i32_1 = arith.constant 0 : i32
    return %c0_i32, %c0_i32_0 : i32, i32
  }
  func.func @transform_4(%arg0: i32) -> (i32, i32) {
    %c0_i32 = arith.constant 0 : i32
    %c0_i32_0 = arith.constant 0 : i32
    %c0_i32_1 = arith.constant 0 : i32
    return %c0_i32, %c0_i32_0 : i32, i32
  }
  func.func @transform_5(%arg0: i32) -> (i32, i32) {
    %c0_i32 = arith.constant 0 : i32
    %c0_i32_0 = arith.constant 0 : i32
    return %arg0, %c0_i32 : i32, i32
  }
}

</mosaic_0001>

<llo_original>
// kernel: tpu_custom_call.1
$region0: #{tpu_custom_call.1}
  #allocation0 [shape = 'u32[]', space=smem, size = 0x4, offset = 0x4, fixed_abs, tag = 'smem constant byte address 0x4 - core index']
  #allocation1 [shape = 'u32[72,128]{1,0:T(1,128)}', space=vmem, size = 0x9000, scoped, tag = 'internal scratch']
  #allocation2 [shape = 'f32[8,128]{1,0:T(8,128)}', space=vmem, size = 0x1000, scoped, tag = 'scratch operand']
  %s0 = inlined_call_operand.hbm [shape: bf16[16,128], index: 0, kind: input, shape index: {}]
  %s1 = inlined_call_operand.hbm [shape: bf16[128,128], index: 1, kind: input, shape index: {}]
  %s2 = inlined_call_operand.vmem [shape: f32[1,128], index: 2, kind: input, shape index: {}]
  %s3 = inlined_call_operand.hbm [shape: bf16[128,128], index: 3, kind: input, shape index: {}]
  %s4 = inlined_call_operand.vmem [shape: f32[1,128], index: 4, kind: input, shape index: {}]
  %s5 = inlined_call_operand.hbm [shape: f32[16,128], index: 5, kind: output, shape index: {}]
  %s6 = sld [smem:[#allocation0]]
  $region65: #{tpu_custom_call.1} parent=0
    _
  %s8 = ssub.s32 1, %s6
  %s9 = scalar_select 0, %s8, %s6
  $region1: #{tpu_custom_call.1} parent=0
    #allocation3 [shape = 'u8[4096]{0}', space=vmem, size = 0x1000, scoped, tag = 'input window, operand 0']
    #allocation4 [shape = 's32[2]{0}', space=sflag, size = 0x8, scoped, tag = 'scoped memory for tpu_custom_call.1']
    #allocation5 [shape = 's32[2]{0}', space=sflag, size = 0x8, scoped, tag = 'scoped memory for tpu_custom_call.1']
    #allocation6 [shape = 'u8[32768]{0}', space=vmem, size = 0x8000, scoped, tag = 'input window, operand 1, single buffered']
    #allocation7 [shape = 's32[1]{0}', space=sflag, size = 0x4, scoped, tag = 'scoped memory for tpu_custom_call.1']
    #allocation8 [shape = 'u8[32768]{0}', space=vmem, size = 0x8000, scoped, tag = 'input window, operand 3, single buffered']
    #allocation9 [shape = 'u8[8192]{0}', space=vmem, size = 0x2000, scoped, tag = 'output window, operand 0']
    %10 = vsyncpa [#allocation4], 0
    %s11 = scalar_lea.sflag [#allocation4], 1
    %12 = vsyncpa %s11, 0
    %13 = vsyncpa [#allocation7], 0
    %14 = vsyncpa [#allocation5], 0
    %s15 = scalar_lea.sflag [#allocation5], 1
    %16 = vsyncpa %s15, 0
    loop: start=0, step=1, limit=4
    $region2: #{tpu_custom_call.1} parent=1 // loop_pre_header
      _
    $region3: #{tpu_custom_call.1} parent=1 // loop_header
      %s18 = sphi 0, %s22
      %p19 = scmp.ge.s32.totalorder %s18, 4
      %s28 = sphi 0, %s30
      %s31 = sphi 0, %s28
      %s32 = sphi 0, %s31
      %s48 = sphi 0, %s32
      %s52 = sphi 0, %s52
      %s54 = sphi 0, %s52
      %s55 = sphi 0, %s54
      %s69 = sphi 0, %s55
      %s73 = sphi 0, %s73
      %s75 = sphi 0, %s73
      %s76 = sphi 0, %s75
      %s90 = sphi 0, %s76
      %s94 = sphi 0, %s94
      %s96 = sphi 0, %s94
      %s97 = sphi 0, %s96
      %s111 = sphi 0, %s97
      %s115 = sphi 0, %s115
      %s117 = sphi 0, %s115
      %s118 = sphi 0, %s117
      %s132 = sphi 0, %s118
      %s138 = sphi 0, %s140
      %s141 = sphi 0, %s138
      %s142 = sphi 0, %s141
      %s158 = sphi 0, %s142
    $region4: #{tpu_custom_call.1} parent=1 // loop_header_branch
      %21 = sbr.rel (%p19) target = $region8
    $region5: #{tpu_custom_call.1} parent=1 // loop_body
      %s23 = ssub.s32 %s18, 1
      %s24 = ssub.s32 %s18, 2
      %s25 = sadd.s32 %s18, 1
      %s26 = ssub.s32 %s18, %s25
      %p27 = scmp.eq.s32.totalorder %s26, 0
      %s29 = sadd.s32 %s28, 1
      %s30 = scalar_select %p27, %s28, %s29
      %p33 = pneg %p27
      %p34 = scmp.eq.s32.totalorder %s18, 1
      %p35 = por %p33, %p34
      %p36 = scmp.ne.s32.totalorder %s28, %s31
      %p37 = scmp.eq.s32.totalorder %s18, 0
      %p38 = por %p36, %p37
      %p39 = scmp.ne.s32.totalorder %s28, %s31
      %p40 = scmp.eq.s32.totalorder %s23, 1
      %p41 = por %p39, %p40
      %p42 = scmp.ne.s32.totalorder %s31, %s32
      %p43 = scmp.eq.s32.totalorder %s23, 0
      %p44 = por %p42, %p43
      %p45 = scmp.ne.s32.totalorder %s31, %s32
      %p46 = scmp.eq.s32.totalorder %s24, 1
      %p47 = por %p45, %p46
      %p49 = scmp.ne.s32.totalorder %s32, %s48
      %p50 = scmp.eq.s32.totalorder %s24, 0
      %p51 = por %p49, %p50
      %s53 = sadd.s32 %s52, 1
      %p56 = scmp.eq.s32.totalorder %s18, 1
      %p57 = scmp.ne.s32.totalorder %s52, %s54
      %p58 = scmp.eq.s32.totalorder %s18, 0
      %p59 = por %p57, %p58
      %p60 = scmp.ne.s32.totalorder %s52, %s54
      %p61 = scmp.eq.s32.totalorder %s23, 1
      %p62 = por %p60, %p61
      %p63 = scmp.ne.s32.totalorder %s54, %s55
      %p64 = scmp.eq.s32.totalorder %s23, 0
      %p65 = por %p63, %p64
      %p66 = scmp.ne.s32.totalorder %s54, %s55
      %p67 = scmp.eq.s32.totalorder %s24, 1
      %p68 = por %p66, %p67
      %p70 = scmp.ne.s32.totalorder %s55, %s69
      %p71 = scmp.eq.s32.totalorder %s24, 0
      %p72 = por %p70, %p71
      %s74 = sadd.s32 %s73, 1
      %p77 = scmp.eq.s32.totalorder %s18, 1
      %p78 = scmp.ne.s32.totalorder %s73, %s75
      %p79 = scmp.eq.s32.totalorder %s18, 0
      %p80 = por %p78, %p79
      %p81 = scmp.ne.s32.totalorder %s73, %s75
      %p82 = scmp.eq.s32.totalorder %s23, 1
      %p83 = por %p81, %p82
      %p84 = scmp.ne.s32.totalorder %s75, %s76
      %p85 = scmp.eq.s32.totalorder %s23, 0
      %p86 = por %p84, %p85
      %p87 = scmp.ne.s32.totalorder %s75, %s76
      %p88 = scmp.eq.s32.totalorder %s24, 1
      %p89 = por %p87, %p88
      %p91 = scmp.ne.s32.totalorder %s76, %s90
      %p92 = scmp.eq.s32.totalorder %s24, 0
      %p93 = por %p91, %p92
      %s95 = sadd.s32 %s94, 1
      %p98 = scmp.eq.s32.totalorder %s18, 1
      %p99 = scmp.ne.s32.totalorder %s94, %s96
      %p100 = scmp.eq.s32.totalorder %s18, 0
      %p101 = por %p99, %p100
      %p102 = scmp.ne.s32.totalorder %s94, %s96
      %p103 = scmp.eq.s32.totalorder %s23, 1
      %p104 = por %p102, %p103
      %p105 = scmp.ne.s32.totalorder %s96, %s97
      %p106 = scmp.eq.s32.totalorder %s23, 0
      %p107 = por %p105, %p106
      %p108 = scmp.ne.s32.totalorder %s96, %s97
      %p109 = scmp.eq.s32.totalorder %s24, 1
      %p110 = por %p108, %p109
      %p112 = scmp.ne.s32.totalorder %s97, %s111
      %p113 = scmp.eq.s32.totalorder %s24, 0
      %p114 = por %p112, %p113
      %s116 = sadd.s32 %s115, 1
      %p119 = scmp.eq.s32.totalorder %s18, 1
      %p120 = scmp.ne.s32.totalorder %s115, %s117
      %p121 = scmp.eq.s32.totalorder %s18, 0
      %p122 = por %p120, %p121
      %p123 = scmp.ne.s32.totalorder %s115, %s117
      %p124 = scmp.eq.s32.totalorder %s23, 1
      %p125 = por %p123, %p124
      %p126 = scmp.ne.s32.totalorder %s117, %s118
      %p127 = scmp.eq.s32.totalorder %s23, 0
      %p128 = por %p126, %p127
      %p129 = scmp.ne.s32.totalorder %s117, %s118
      %p130 = scmp.eq.s32.totalorder %s24, 1
      %p131 = por %p129, %p130
      %p133 = scmp.ne.s32.totalorder %s118, %s132
      %p134 = scmp.eq.s32.totalorder %s24, 0
      %p135 = por %p133, %p134
      %s136 = ssub.s32 %s18, %s25
      %p137 = scmp.eq.s32.totalorder %s136, 0
      %s139 = sadd.s32 %s138, 1
      %s140 = scalar_select %p137, %s138, %s139
      %p143 = pneg %p137
      %p144 = scmp.eq.s32.totalorder %s18, 1
      %p145 = por %p143, %p144
      %p146 = scmp.ne.s32.totalorder %s138, %s141
      %p147 = scmp.eq.s32.totalorder %s18, 0
      %p148 = por %p146, %p147
      %p149 = scmp.ne.s32.totalorder %s138, %s141
      %p150 = scmp.eq.s32.totalorder %s23, 1
      %p151 = por %p149, %p150
      %p152 = scmp.ne.s32.totalorder %s141, %s142
      %p153 = scmp.eq.s32.totalorder %s23, 0
      %p154 = por %p152, %p153
      %p155 = scmp.ne.s32.totalorder %s141, %s142
      %p156 = scmp.eq.s32.totalorder %s24, 1
      %p157 = por %p155, %p156
      %p159 = scmp.ne.s32.totalorder %s142, %s158
      %p160 = scmp.eq.s32.totalorder %s24, 0
      %p161 = por %p159, %p160
      %p162 = scmp.le.s32.totalorder 1, %s18
      %p163 = scmp.lt.s32.totalorder %s18, 3
      %p164 = pnand %p162, %p163
      %p165 = pneg %p164
      // Predicated region
      $region9: #{tpu_custom_call.1} parent=5 // pred_check
        _
      $region10: #{tpu_custom_call.1} parent=5 // pred_check_branch
        %167 = sbr.rel (%p164) target = $region12
      $region11: #{tpu_custom_call.1} parent=5 // pred_region
        %s168 = ssub.s32 %s18, 1
        // Predicated region
        $region13: #{tpu_custom_call.1} parent=11 // pred_check
          %p169 = pneg %p65
        $region14: #{tpu_custom_call.1} parent=11 // pred_check_branch
          %171 = sbr.rel (%p169) target = $region16
        $region15: #{tpu_custom_call.1} parent=11 // pred_region
          %173 = vsyncadd [#allocation7], 0
          %s174 = sshll.u32 %s1, 4
          %s175 = int_to_ptr.hbm [resolvable:$true] %s174
          %s176 = sshll.u32 [#allocation6], 4
          %s177 = int_to_ptr.vmem [resolvable:$true] %s176
          %182 = dma.hbm_to_vmem [thread:$0]  %s175, 1024, %s177, [#allocation7], 64, 64, 4
        $region16: #{tpu_custom_call.1} parent=11 // pred_fallthru
          _
        // Predicated region
        $region17: #{tpu_custom_call.1} parent=11 // pred_check
          %p183 = pneg %p86
        $region18: #{tpu_custom_call.1} parent=11 // pred_check_branch
          %185 = sbr.rel (%p183) target = $region20
        $region19: #{tpu_custom_call.1} parent=11 // pred_region
          _
        $region20: #{tpu_custom_call.1} parent=11 // pred_fallthru
          _
        // Predicated region
        $region21: #{tpu_custom_call.1} parent=11 // pred_check
          %p186 = pneg %p107
        $region22: #{tpu_custom_call.1} parent=11 // pred_check_branch
          %188 = sbr.rel (%p186) target = $region24
        $region23: #{tpu_custom_call.1} parent=11 // pred_region
          %190 = vsyncadd [#allocation7], 0
          %s191 = sshll.u32 %s3, 4
          %s192 = int_to_ptr.hbm [resolvable:$true] %s191
          %s193 = sshll.u32 [#allocation8], 4
          %s194 = int_to_ptr.vmem [resolvable:$true] %s193
          %199 = dma.hbm_to_vmem [thread:$0]  %s192, 1024, %s194, [#allocation7], 64, 64, 4
        $region24: #{tpu_custom_call.1} parent=11 // pred_fallthru
          _
        // Predicated region
        $region25: #{tpu_custom_call.1} parent=11 // pred_check
          %p200 = pneg %p128
        $region26: #{tpu_custom_call.1} parent=11 // pred_check_branch
          %202 = sbr.rel (%p200) target = $region28
        $region27: #{tpu_custom_call.1} parent=11 // pred_region
          _
        $region28: #{tpu_custom_call.1} parent=11 // pred_fallthru
          _
      $region12: #{tpu_custom_call.1} parent=5 // pred_fallthru
        _
      %p203 = scmp.lt.s32.totalorder %s18, 2
      // Predicated region
      $region29: #{tpu_custom_call.1} parent=5 // pred_check
        %p204 = pneg %p203
      $region30: #{tpu_custom_call.1} parent=5 // pred_check_branch
        %206 = sbr.rel (%p204) target = $region32
      $region31: #{tpu_custom_call.1} parent=5 // pred_region
        // Predicated region
        $region33: #{tpu_custom_call.1} parent=31 // pred_check
          %p207 = pneg %p38
        $region34: #{tpu_custom_call.1} parent=31 // pred_check_branch
          %209 = sbr.rel (%p207) target = $region36
        $region35: #{tpu_custom_call.1} parent=31 // pred_region
          %s210 = sand.u32 %s28, 1
          %s211 = scalar_lea.sflag [#allocation4], %s210
          %s212 = sand.u32 %s28, 1
          %s213 = smul.addr %s212, 4
          %s214 = scalar_lea.vmem [#allocation3], %s213
          %216 = vsyncadd %s211, 0
          %s217 = smul.addr %s18, 4
          %s218 = scalar_lea.hbm %s0, %s217
          %s220 = sshll.u32 %s218, 4
          %s221 = int_to_ptr.hbm [resolvable:$true] %s220
          %s222 = sshll.u32 %s214, 4
          %s223 = int_to_ptr.vmem [resolvable:$true] %s222
          %225 = dma.hbm_to_vmem [thread:$0]  %s221, 64, %s223, %s211
        $region36: #{tpu_custom_call.1} parent=31 // pred_fallthru
          _
      $region32: #{tpu_custom_call.1} parent=5 // pred_fallthru
        _
      %p226 = scmp.le.s32.totalorder 1, %s18
      %p227 = scmp.lt.s32.totalorder %s18, 3
      %p228 = pnand %p226, %p227
      %p229 = pneg %p228
      // Predicated region
      $region37: #{tpu_custom_call.1} parent=5 // pred_check
        _
      $region38: #{tpu_custom_call.1} parent=5 // pred_check_branch
        %231 = sbr.rel (%p228) target = $region40
      $region39: #{tpu_custom_call.1} parent=5 // pred_region
        %s232 = ssub.s32 %s18, 1
        %s233 = sand.u32 %s31, 1
        %s234 = scalar_lea.sflag [#allocation4], %s233
        %s235 = sand.u32 %s31, 1
        %s236 = smul.addr %s235, 4
        %s237 = scalar_lea.vmem [#allocation3], %s236
        // Predicated region
        $region41: #{tpu_custom_call.1} parent=39 // pred_check
          %p238 = pneg %p44
        $region42: #{tpu_custom_call.1} parent=39 // pred_check_branch
          %240 = sbr.rel (%p238) target = $region44
        $region43: #{tpu_custom_call.1} parent=39 // pred_region
          %242 = dma.done %s234, 64
        $region44: #{tpu_custom_call.1} parent=39 // pred_fallthru
          _
        // Predicated region
        $region45: #{tpu_custom_call.1} parent=39 // pred_check
          %p243 = pneg %p65
        $region46: #{tpu_custom_call.1} parent=39 // pred_check_branch
          %245 = sbr.rel (%p243) target = $region48
        $region47: #{tpu_custom_call.1} parent=39 // pred_region
          %247 = dma.done [#allocation7], 1024
        $region48: #{tpu_custom_call.1} parent=39 // pred_fallthru
          _
        // Predicated region
        $region49: #{tpu_custom_call.1} parent=39 // pred_check
          %p248 = pneg %p107
        $region50: #{tpu_custom_call.1} parent=39 // pred_check_branch
          %250 = sbr.rel (%p248) target = $region52
        $region51: #{tpu_custom_call.1} parent=39 // pred_region
          %252 = dma.done [#allocation7], 1024
        $region52: #{tpu_custom_call.1} parent=39 // pred_fallthru
          _
        %s253 = sand.u32 %s31, 1
        %s254 = scalar_lea.sflag [#allocation4], %s253
        %s255 = sand.u32 %s31, 1
        %s256 = smul.addr %s255, 4
        %s257 = scalar_lea.vmem [#allocation3], %s256
        %p258 = pneg %p44
        %p259 = pneg %p41
        %p260 = pneg %p65
        %p261 = pneg %p62
        %p262 = pneg %p86
        %p263 = pneg %p83
        %p264 = pneg %p107
        %p265 = pneg %p104
        %p266 = pneg %p128
        %p267 = pneg %p125
        %p268 = pneg %p154
        %p269 = pneg %p151
        %s270 = sand.u32 %s141, 1
        %s271 = scalar_lea.sflag [#allocation5], %s270
        %s272 = sand.u32 %s141, 1
        %s273 = smul.addr %s272, 8
        %s274 = scalar_lea.vmem [#allocation9], %s273
        %v275 = vld [vmem:[%s237] sm:$0xf]
        %276 = vst [vmem:[#allocation2] sm:$0xff] 0.0
        %v277 = vld [vmem:[#allocation6] sm:$0xf]
        %v278 = vld [vmem:[#allocation6 + $0x4] sm:$0xf]
        %v279 = vld [vmem:[#allocation6 + $0x8] sm:$0xf]
        %v280 = vld [vmem:[#allocation6 + $0xc] sm:$0xf]
        %v281 = vld [vmem:[#allocation6 + $0x10] sm:$0xf]
        %v282 = vld [vmem:[#allocation6 + $0x14] sm:$0xf]
        %v283 = vld [vmem:[#allocation6 + $0x18] sm:$0xf]
        %v284 = vld [vmem:[#allocation6 + $0x1c] sm:$0xf]
        %v285 = vld [vmem:[#allocation6 + $0x20] sm:$0xf]
        %v286 = vld [vmem:[#allocation6 + $0x24] sm:$0xf]
        %v287 = vld [vmem:[#allocation6 + $0x28] sm:$0xf]
        %v288 = vld [vmem:[#allocation6 + $0x2c] sm:$0xf]
        %v289 = vld [vmem:[#allocation6 + $0x30] sm:$0xf]
        %v290 = vld [vmem:[#allocation6 + $0x34] sm:$0xf]
        %v291 = vld [vmem:[#allocation6 + $0x38] sm:$0xf]
        %v292 = vld [vmem:[#allocation6 + $0x3c] sm:$0xf]
        %v293 = vld [vmem:[%s2] sm:$0x1]
        %v295 = vperm.slane %v293, 0
        %v313 = vunpack.c.l.b16 %v277
        %v314 = vunpack.c.l.b16 %v278
        %v315 = vunpack.c.l.b16 %v279
        %v316 = vunpack.c.l.b16 %v280
        %v317 = vunpack.c.l.b16 %v281
        %v318 = vunpack.c.l.b16 %v282
        %v319 = vunpack.c.l.b16 %v283
        %v320 = vunpack.c.l.b16 %v284
        %v321 = vunpack.c.l.b16 %v285
        %v322 = vunpack.c.l.b16 %v286
        %v323 = vunpack.c.l.b16 %v287
        %v324 = vunpack.c.l.b16 %v288
        %v325 = vunpack.c.l.b16 %v289
        %v326 = vunpack.c.l.b16 %v290
        %v327 = vunpack.c.l.b16 %v291
        %v328 = vunpack.c.l.b16 %v292
        %v329 = vpack.c.b16 %v314, %v313
        %v330 = vpack.c.b16 %v316, %v315
        %v331 = vpack.c.b16 %v318, %v317
        %v332 = vpack.c.b16 %v320, %v319
        %v333 = vpack.c.b16 %v322, %v321
        %v334 = vpack.c.b16 %v324, %v323
        %v335 = vpack.c.b16 %v326, %v325
        %v336 = vpack.c.b16 %v328, %v327
        %345 = vmatpush.bf16.msra.mxu0 %v336
        %346 = vmatpush.bf16.msra.mxu0 %v335
        %347 = vmatpush.bf16.msra.mxu0 %v334
        %348 = vmatpush.bf16.msra.mxu0 %v333
        %349 = vmatpush.bf16.msra.mxu0 %v332
        %350 = vmatpush.bf16.msra.mxu0 %v331
        %351 = vmatpush.bf16.msra.mxu0 %v330
        %352 = vmatpush.bf16.msra.mxu0 %v329
        %353 = vmatmul.bf16.gmra.mxu0 %v275
        %v354 = vpop.f32.mrf.mxu0
        %v355 = vadd.f32 %v295, %v354
        %v356 = vpop.f32.mrf.mxu0
        %357 = vdwg.mxu0
        %v358 = vmul.f32 %v355, 0.5
        %v359 = vmul.f32 %v355, 0.044715
        %v360 = vmul.f32 %v359, %v355
        %v361 = vmul.f32 %v360, %v355
        %v362 = vadd.f32 %v355, %v361
        %v363 = vmul.f32 %v362, 0.7978846
        %v364 = vtanh.pop %v363
        %v365 = vadd.f32 %v364, 1.0
        %v366 = vmul.f32 %v358, %v365
        %v367 = vld [vmem:[#allocation2] sm:$0xff]
        %v368 = vpack.c.bf16 %v366, %v366
        %v369 = vld [vmem:[#allocation8] sm:$0xf]
        %v370 = vld [vmem:[#allocation8 + $0x4] sm:$0xf]
        %v371 = vld [vmem:[#allocation8 + $0x8] sm:$0xf]
        %v372 = vld [vmem:[#allocation8 + $0xc] sm:$0xf]
        %v373 = vld [vmem:[#allocation8 + $0x10] sm:$0xf]
        %v374 = vld [vmem:[#allocation8 + $0x14] sm:$0xf]
        %v375 = vld [vmem:[#allocation8 + $0x18] sm:$0xf]
        %v376 = vld [vmem:[#allocation8 + $0x1c] sm:$0xf]
        %v377 = vld [vmem:[#allocation8 + $0x20] sm:$0xf]
        %v378 = vld [vmem:[#allocation8 + $0x24] sm:$0xf]
        %v379 = vld [vmem:[#allocation8 + $0x28] sm:$0xf]
        %v380 = vld [vmem:[#allocation8 + $0x2c] sm:$0xf]
        %v381 = vld [vmem:[#allocation8 + $0x30] sm:$0xf]
        %v382 = vld [vmem:[#allocation8 + $0x34] sm:$0xf]
        %v383 = vld [vmem:[#allocation8 + $0x38] sm:$0xf]
        %v384 = vld [vmem:[#allocation8 + $0x3c] sm:$0xf]
        %v401 = vunpack.c.l.b16 %v369
        %v402 = vunpack.c.l.b16 %v370
        %v403 = vunpack.c.l.b16 %v371
        %v404 = vunpack.c.l.b16 %v372
        %v405 = vunpack.c.l.b16 %v373
        %v406 = vunpack.c.l.b16 %v374
        %v407 = vunpack.c.l.b16 %v375
        %v408 = vunpack.c.l.b16 %v376
        %v409 = vunpack.c.l.b16 %v377
        %v410 = vunpack.c.l.b16 %v378
        %v411 = vunpack.c.l.b16 %v379
        %v412 = vunpack.c.l.b16 %v380
        %v413 = vunpack.c.l.b16 %v381
        %v414 = vunpack.c.l.b16 %v382
        %v415 = vunpack.c.l.b16 %v383
        %v416 = vunpack.c.l.b16 %v384
        %v417 = vpack.c.b16 %v402, %v401
        %v418 = vpack.c.b16 %v404, %v403
        %v419 = vpack.c.b16 %v406, %v405
        %v420 = vpack.c.b16 %v408, %v407
        %v421 = vpack.c.b16 %v410, %v409
        %v422 = vpack.c.b16 %v412, %v411
        %v423 = vpack.c.b16 %v414, %v413
        %v424 = vpack.c.b16 %v416, %v415
        %433 = vmatpush.bf16.msra.mxu0 %v424
        %434 = vmatpush.bf16.msra.mxu0 %v423
        %435 = vmatpush.bf16.msra.mxu0 %v422
        %436 = vmatpush.bf16.msra.mxu0 %v421
        %437 = vmatpush.bf16.msra.mxu0 %v420
        %438 = vmatpush.bf16.msra.mxu0 %v419
        %439 = vmatpush.bf16.msra.mxu0 %v418
        %440 = vmatpush.bf16.msra.mxu0 %v417
        %441 = vmatmul.bf16.gmra.mxu0 %v368
        %v442 = vpop.f32.mrf.mxu0
        %v443 = vadd.f32 0.0, %v442
        %v444 = vpop.f32.mrf.mxu0
        %445 = vdwg.mxu0
        %v446 = vadd.f32 %v367, %v443
        %447 = vst [vmem:[#allocation2] sm:$0xff] %v446
        %v448 = vld [vmem:[#allocation2] sm:$0xff]
        %v449 = vld [vmem:[%s4] sm:$0x1]
        %v451 = vperm.slane %v449, 0
        %v453 = vadd.f32 %v448, %v451
        %454 = vst [vmem:[%s274] sm:$0xff] %v453
        %s455 = sand.u32 %s141, 1
        %s456 = scalar_lea.sflag [#allocation5], %s455
        %s457 = sand.u32 %s141, 1
        %s458 = smul.addr %s457, 8
        %s459 = scalar_lea.vmem [#allocation9], %s458
        // Predicated region
        $region53: #{tpu_custom_call.1} parent=39 // pred_check
          %p460 = pneg %p151
        $region54: #{tpu_custom_call.1} parent=39 // pred_check_branch
          %462 = sbr.rel (%p460) target = $region56
        $region55: #{tpu_custom_call.1} parent=39 // pred_region
          %464 = vsyncadd %s456, 0
          %s465 = smul.addr %s23, 8
          %s466 = scalar_lea.hbm %s5, %s465
          %s468 = sshll.u32 %s459, 4
          %s469 = int_to_ptr.vmem [resolvable:$true] %s468
          %s470 = sshll.u32 %s466, 4
          %s471 = int_to_ptr.hbm [resolvable:$true] %s470
          %473 = dma.vmem_to_hbm [thread:$0]  %s469, 128, %s471, %s456
        $region56: #{tpu_custom_call.1} parent=39 // pred_fallthru
          _
      $region40: #{tpu_custom_call.1} parent=5 // pred_fallthru
        _
      %p474 = scmp.le.s32.totalorder 2, %s18
      // Predicated region
      $region57: #{tpu_custom_call.1} parent=5 // pred_check
        %p475 = pneg %p474
      $region58: #{tpu_custom_call.1} parent=5 // pred_check_branch
        %477 = sbr.rel (%p475) target = $region60
      $region59: #{tpu_custom_call.1} parent=5 // pred_region
        %s478 = ssub.s32 %s18, 2
        // Predicated region
        $region61: #{tpu_custom_call.1} parent=59 // pred_check
          %p479 = pneg %p157
        $region62: #{tpu_custom_call.1} parent=59 // pred_check_branch
          %481 = sbr.rel (%p479) target = $region64
        $region63: #{tpu_custom_call.1} parent=59 // pred_region
          %s482 = sand.u32 %s142, 1
          %s483 = scalar_lea.sflag [#allocation5], %s482
          %s484 = sand.u32 %s142, 1
          %s485 = smul.addr %s484, 8
          %s486 = scalar_lea.vmem [#allocation9], %s485
          %488 = dma.done %s483, 128
        $region64: #{tpu_custom_call.1} parent=59 // pred_fallthru
          _
      $region60: #{tpu_custom_call.1} parent=5 // pred_fallthru
        _
    $region6: #{tpu_custom_call.1} parent=1 // loop_footer
      %s22 = sadd.s32 1, %s18
    $region7: #{tpu_custom_call.1} parent=1 // loop_footer_branch
      %17 = sbr.rel target = $region3
    $region8: #{tpu_custom_call.1} parent=1 // loop_exit
      _
    %489 = vsyncpa [#allocation4], 1
    %s490 = scalar_lea.sflag [#allocation4], 1
    %491 = vsyncpa %s490, 1
    %492 = vsyncpa [#allocation7], 1
    %493 = vsyncpa [#allocation5], 1
    %s494 = scalar_lea.sflag [#allocation5], 1
    %495 = vsyncpa %s494, 1

</llo_original>
